<compile_context>
chip_gen: v5e
topology: v5e:2x2
jax: 0.10.0
libtpu: 0.0.40
codegen_flags: <defaults>
</compile_context>

<pallas_src>
import math

import jax
import jax.numpy as jnp
from jax.experimental import pallas as pl
from jax.experimental.pallas import tpu as pltpu


_SMALL_OUTPUT_BYPASS_BYTES = 256 * 1024   # below this, pallas_call is pure overhead
_TARGET_BLOCK_BYTES = 2 * 1024 * 1024     # ~2 MiB blocks; 4 live buffers ~8 MiB scoped VMEM


def _round_up(x, m):
    return ((x + m - 1) // m) * m


def _round_down(x, m):
    return (x // m) * m


# --------------------------------------------------------------------------- kernels
def _add_bias_kernel(w_ref, b_ref, o_ref):
    # Packed path: the weight tile is already in the output layout.
    o_ref[...] = w_ref[...] + b_ref[...]


def _transpose_add_bias_kernel(w_ref, b_ref, o_ref):
    # General path: w tile is (tn_emb, tm_size) in the weight's natural layout.
    # Transpose in-kernel (XLU slot, free vs. the DMA-bound pipeline), add bias.
    o_ref[...] = jnp.transpose(w_ref[...]) + b_ref[...]


# --------------------------------------------------------------------------- paths
def _sgc_packed_lanes(weight, bias, size, emb_dim):
    """emb_dim < 128, 128 % emb_dim == 0, (size*emb_dim) % 128 == 0.

    Present the output as a (size*emb_dim/128, 128) lane-dense slab. The tiny
    wrapper-side transpose/reshape/tile is pure layout plumbing.
    """
    lanes = 128
    rows = (size * emb_dim) // lanes
    w2d = weight.T.reshape(rows, lanes)
    b2d = jnp.tile(bias, lanes // emb_dim).reshape(1, lanes)

    max_rows = max(8, _round_down(_TARGET_BLOCK_BYTES // (4 * lanes), 8))  # ~4096
    row_tile = rows if rows <= max_rows else max_rows
    grid = (pl.cdiv(rows, row_tile),)

    out2d = pl.pallas_call(
        _add_bias_kernel,
        out_shape=jax.ShapeDtypeStruct((rows, lanes), jnp.float32),
        grid_spec=pltpu.PrefetchScalarGridSpec(
            num_scalar_prefetch=0,
            grid=grid,
            in_specs=[
                pl.BlockSpec((row_tile, lanes), lambda i: (i, 0)),
                pl.BlockSpec((1, lanes), lambda i: (0, 0)),
            ],
            out_specs=pl.BlockSpec((row_tile, lanes), lambda i: (i, 0)),
        ),
        compiler_params=pltpu.CompilerParams(
            dimension_semantics=("parallel",),
        ),
        # w2d is a kernel-local temp with the same shape/dtype as the output:
        # alias it so no extra (rows, 128) HBM allocation / buffer is needed.
        input_output_aliases={0: 0},
    )(w2d, b2d)
    return out2d.reshape(size, emb_dim)


def _sgc_transpose_general(weight, bias, size, emb_dim):
    """General path: weight kept in natural (emb_dim, size) layout, transpose done
    in-kernel; emb_dim lane-padded to a multiple of 128 for unmasked stores."""
    emb_pad = _round_up(emb_dim, 128)
    if emb_pad != emb_dim:
        # Lane-pad (sliced off at the end) so output stores stay full-lane vst.
        weight = jnp.pad(weight, ((0, emb_pad - emb_dim), (0, 0)))
        bias = jnp.pad(bias, (0, emb_pad - emb_dim))
    b2d = bias.reshape(1, emb_pad)

    # Byte-budgeted tiles: both tile dims are multiples of 128 (or the full dim)
    # so weight blocks are (8,128)-legal and output stores are lane-dense.
    tn = min(emb_pad, 512)
    if size < 128:
        tm = size  # full dim (allowed regardless of divisibility)
    else:
        tm = max(128, _round_down(_TARGET_BLOCK_BYTES // (4 * tn), 128))
        tm = min(tm, max(128, _round_down(size, 128)))
    grid = (pl.cdiv(size, tm), pl.cdiv(emb_pad, tn))

    out = pl.pallas_call(
        _transpose_add_bias_kernel,
        out_shape=jax.ShapeDtypeStruct((size, emb_pad), jnp.float32),
        grid_spec=pltpu.PrefetchScalarGridSpec(
            num_scalar_prefetch=0,
            grid=grid,
            in_specs=[
                # Weight in natural layout; block indices swapped -> no HBM
                # materialization of weight.T by XLA.
                pl.BlockSpec((tn, tm), lambda i, j: (j, i)),
                pl.BlockSpec((1, tn), lambda i, j: (0, j)),
            ],
            out_specs=pl.BlockSpec((tm, tn), lambda i, j: (i, j)),
        ),
        compiler_params=pltpu.CompilerParams(
            dimension_semantics=("parallel", "parallel"),
        ),
    )(weight, b2d)

    if emb_pad != emb_dim:
        out = out[:, :emb_dim]
    return out


# --------------------------------------------------------------------------- wrapper
def sgc_forward(weight, bias, *, force_pallas=False):
    """SGC.forward(): eye(size) @ weight.T + bias == weight.T + bias.

    weight: (emb_dim, size) float32 (torch nn.Linear layout)
    bias  : (emb_dim,)      float32
    returns (size, emb_dim) float32
    """
    emb_dim, size = weight.shape
    weight = weight.astype(jnp.float32)
    bias = bias.astype(jnp.float32)

    out_bytes = size * emb_dim * 4
    if not force_pallas and out_bytes < _SMALL_OUTPUT_BYPASS_BYTES:
        # At the module's typical shapes the pallas_call fixed overhead dwarfs
        # the <1us of VPU work; let XLA fuse the broadcast-add.
        return weight.T + bias

    if emb_dim < 128 and 128 % emb_dim == 0 and (size * emb_dim) % 128 == 0:
        return _sgc_packed_lanes(weight, bias, size, emb_dim)
    return _sgc_transpose_general(weight, bias, size, emb_dim)


def init_sgc_params(key, size, emb_dim):
    """Deterministic init mirroring torch.nn.Linear(size, emb_dim) defaults:
    weight/bias ~ U(-1/sqrt(size), 1/sqrt(size))."""
    kw, kb = jax.random.split(key)
    bound = 1.0 / math.sqrt(size)
    weight = jax.random.uniform(kw, (emb_dim, size), jnp.float32, -bound, bound)
    bias = jax.random.uniform(kb, (emb_dim,), jnp.float32, -bound, bound)
    return weight, bias


# TODO(synk): SGC.normalize() is a numpy preprocessing helper unused by forward(); not ported.

if __name__ == "__main__":
    # 1) Shipped SGC shape (voc_size=16, emb_dim=64): default bypass path and the
    #    forced Pallas packed-lane path.
    size, emb_dim = 16, 64
    weight, bias = init_sgc_params(jax.random.PRNGKey(0), size, emb_dim)
    ref = jnp.eye(size, dtype=jnp.float32) @ weight.T + bias

    out_bypass = jax.block_until_ready(sgc_forward(weight, bias))
    out_packed = jax.block_until_ready(sgc_forward(weight, bias, force_pallas=True))
    assert out_bypass.shape == (size, emb_dim)
    assert out_packed.shape == (size, emb_dim)
    assert jnp.allclose(out_bypass, ref, atol=1e-5, rtol=1e-5)
    assert jnp.allclose(out_packed, ref, atol=1e-5, rtol=1e-5)

    # 2) emb_dim >= 128: exercises the general in-kernel-transpose path.
    size, emb_dim = 256, 256
    weight, bias = init_sgc_params(jax.random.PRNGKey(1), size, emb_dim)
    ref = jnp.eye(size, dtype=jnp.float32) @ weight.T + bias
    out = jax.block_until_ready(sgc_forward(weight, bias, force_pallas=True))
    assert out.shape == (size, emb_dim)
    assert jnp.allclose(out, ref, atol=1e-5, rtol=1e-5)

    # 3) Ragged emb_dim / size: exercises lane padding + trailing partial blocks.
    size, emb_dim = 200, 192
    weight, bias = init_sgc_params(jax.random.PRNGKey(2), size, emb_dim)
    ref = jnp.eye(size, dtype=jnp.float32) @ weight.T + bias
    out = jax.block_until_ready(sgc_forward(weight, bias, force_pallas=True))
    assert out.shape == (size, emb_dim)
    assert jnp.allclose(out, ref, atol=1e-5, rtol=1e-5)

    print("KERNEL_OK")
</pallas_src>

<mosaic_0001>
module attributes {stable_mosaic.version = 11 : i64} {
  func.func @_add_bias_kernel(%arg0: i32, %arg1: memref<8x128xf32, #tpu.memory_space<vmem>>, %arg2: memref<1x128xf32, #tpu.memory_space<vmem>>, %arg3: memref<8x128xf32, #tpu.memory_space<vmem>>) attributes {dimension_semantics = [#tpu.dimension_semantics<parallel>], iteration_bounds = array<i64: 1>, scalar_prefetch = 0 : i64, scratch_operands = 0 : i64, tpu.core_type = #tpu.core_type<tc>, window_params = [{transform_indices = @transform_0, window_bounds = array<i64: 8, 128>}, {pipeline_mode = #tpu.pipeline_mode<synchronous>, transform_indices = @transform_1, window_bounds = array<i64: 1, 128>}, {transform_indices = @transform_2, window_bounds = array<i64: 8, 128>}]} {
    %c0 = arith.constant 0 : index
    %c0_0 = arith.constant 0 : index
    %0 = vector.load %arg1[%c0, %c0_0] : memref<8x128xf32, #tpu.memory_space<vmem>>, vector<8x128xf32>
    %c0_1 = arith.constant 0 : index
    %c0_2 = arith.constant 0 : index
    %1 = vector.load %arg2[%c0_1, %c0_2] : memref<1x128xf32, #tpu.memory_space<vmem>>, vector<1x128xf32>
    %2 = vector.broadcast %1 : vector<1x128xf32> to vector<8x128xf32>
    %3 = arith.addf %0, %2 : vector<8x128xf32>
    %c0_3 = arith.constant 0 : index
    %c0_4 = arith.constant 0 : index
    %4 = vector.load %arg3[%c0_3, %c0_4] : memref<8x128xf32, #tpu.memory_space<vmem>>, vector<8x128xf32>
    tpu.vector_store %arg3[%c0_3, %c0_4], %3 {strides = array<i32>} : memref<8x128xf32, #tpu.memory_space<vmem>>, vector<8x128xf32>,
    return
  }
  func.func @transform_0(%arg0: i32) -> (i32, i32) {
    %c0_i32 = arith.constant 0 : i32
    %c0_i32_0 = arith.constant 0 : i32
    return %arg0, %c0_i32 : i32, i32
  }
  func.func @transform_1(%arg0: i32) -> (i32, i32) {
    %c0_i32 = arith.constant 0 : i32
    %c0_i32_0 = arith.constant 0 : i32
    %c0_i32_1 = arith.constant 0 : i32
    return %c0_i32, %c0_i32_0 : i32, i32
  }
  func.func @transform_2(%arg0: i32) -> (i32, i32) {
    %c0_i32 = arith.constant 0 : i32
    %c0_i32_0 = arith.constant 0 : i32
    return %arg0, %c0_i32 : i32, i32
  }
}

</mosaic_0001>

<llo_original>
// kernel: tpu_custom_call.1
$region0: #{tpu_custom_call.1}
  #allocation0 [shape = 'u32[]', space=smem, size = 0x4, offset = 0x4, fixed_abs, tag = 'smem constant byte address 0x4 - core index']
  #allocation1 [shape = 'u32[72,128]{1,0:T(1,128)}', space=vmem, size = 0x9000, scoped, tag = 'internal scratch']
  %s0 = inlined_call_operand.hbm [shape: f32[8,128], index: 0, kind: input, shape index: {}, may-alias: {0,2}]
  %s1 = inlined_call_operand.vmem [shape: f32[1,128], index: 1, kind: input, shape index: {}]
  %s2 = inlined_call_operand.hbm [shape: f32[8,128], index: 2, kind: output, shape index: {}, may-alias: {0,2}]
  %s3 = sld [smem:[#allocation0]]
  $region22: #{tpu_custom_call.1} parent=0
    _
  %s5 = ssub.s32 1, %s3
  %s6 = scalar_select 0, %s5, %s3
  $region1: #{tpu_custom_call.1} parent=0
    #allocation2 [shape = 'u8[4096]{0}', space=vmem, size = 0x1000, scoped, tag = 'input window, operand 0, single buffered']
    #allocation3 [shape = 's32[1]{0}', space=sflag, size = 0x4, scoped, tag = 'scoped memory for tpu_custom_call.1']
    #allocation4 [shape = 's32[1]{0}', space=sflag, size = 0x4, scoped, tag = 'scoped memory for tpu_custom_call.1']
    #allocation5 [shape = 'u8[4096]{0}', space=vmem, size = 0x1000, scoped, tag = 'output window, operand 0, single buffered']
    %7 = vsyncpa [#allocation3], 0
    %8 = vsyncpa [#allocation4], 0
    // Predicated region
    $region2: #{tpu_custom_call.1} parent=1 // pred_check
      _
    $region3: #{tpu_custom_call.1} parent=1 // pred_check_branch
      %10 = sbr.rel (0) target = $region5
    $region4: #{tpu_custom_call.1} parent=1 // pred_region
      %12 = vsyncadd [#allocation3], 0
      %s14 = sshll.u32 %s0, 4
      %s15 = int_to_ptr.hbm [resolvable:$true] %s14
      %s16 = sshll.u32 [#allocation2], 4
      %s17 = int_to_ptr.vmem [resolvable:$true] %s16
      %19 = dma.hbm_to_vmem [thread:$0]  %s15, 128, %s17, [#allocation3]
    $region5: #{tpu_custom_call.1} parent=1 // pred_fallthru
      _
    // Predicated region
    $region6: #{tpu_custom_call.1} parent=1 // pred_check
      _
    $region7: #{tpu_custom_call.1} parent=1 // pred_check_branch
      %21 = sbr.rel (0) target = $region9
    $region8: #{tpu_custom_call.1} parent=1 // pred_region
      _
    $region9: #{tpu_custom_call.1} parent=1 // pred_fallthru
      _
    // Predicated region
    $region10: #{tpu_custom_call.1} parent=1 // pred_check
      _
    $region11: #{tpu_custom_call.1} parent=1 // pred_check_branch
      %23 = sbr.rel (0) target = $region13
    $region12: #{tpu_custom_call.1} parent=1 // pred_region
      %25 = dma.done [#allocation3], 128
    $region13: #{tpu_custom_call.1} parent=1 // pred_fallthru
      _
    %v26 = vld [vmem:[#allocation2] sm:$0xff]
    %v27 = vld [vmem:[%s1] sm:$0x1]
    %v29 = vperm.slane %v27, 0
    %v31 = vadd.f32 %v26, %v29
    %32 = vst [vmem:[#allocation5] sm:$0xff] %v31
    // Predicated region
    $region14: #{tpu_custom_call.1} parent=1 // pred_check
      _
    $region15: #{tpu_custom_call.1} parent=1 // pred_check_branch
      %34 = sbr.rel (0) target = $region17
    $region16: #{tpu_custom_call.1} parent=1 // pred_region
      %36 = vsyncadd [#allocation4], 0
      %s38 = sshll.u32 [#allocation5], 4
      %s39 = int_to_ptr.vmem [resolvable:$true] %s38
      %s40 = sshll.u32 %s2, 4
      %s41 = int_to_ptr.hbm [resolvable:$true] %s40
      %43 = dma.vmem_to_hbm [thread:$0]  %s39, 128, %s41, [#allocation4]
    $region17: #{tpu_custom_call.1} parent=1 // pred_fallthru
      _
    // Predicated region
    $region18: #{tpu_custom_call.1} parent=1 // pred_check
      _
    $region19: #{tpu_custom_call.1} parent=1 // pred_check_branch
      %45 = sbr.rel (0) target = $region21
    $region20: #{tpu_custom_call.1} parent=1 // pred_region
      %47 = dma.done [#allocation4], 128
    $region21: #{tpu_custom_call.1} parent=1 // pred_fallthru
      _
    %48 = vsyncpa [#allocation3], 1
    %49 = vsyncpa [#allocation4], 1

</llo_original>
